<compile_context>
chip_gen: v6e
topology: v6e:2x2x1
jax: 0.10.0
libtpu: 0.0.40
codegen_flags: <defaults>
</compile_context>

<pallas_src>
import jax
import jax.numpy as jnp
import numpy as np
from jax.experimental import pallas as pl
from jax.experimental.pallas import tpu as pltpu


def _conv_block_kernel(p_ref, w_ref, b_ref, o_ref):
    # p_ref: (K_pad, TM)    im2col patches tile (streamed over the grid)
    # w_ref: (Cout, K_pad)  reshaped weights   (resident across grid steps)
    # b_ref: (Cout, 1)      bias               (resident)
    # o_ref: (Cout, TM)     transposed output tile (lane-dense last dim)
    acc = jnp.dot(w_ref[...], p_ref[...], preferred_element_type=jnp.float32)
    acc = jnp.maximum(acc + b_ref[...], 0.0)          # bias + ReLU
    # TODO(synk): batch_norm=False in the default ConvBlock config; BN not implemented.
    o_ref[...] = acc.astype(o_ref.dtype)


def conv_block_forward(x_nchw, w_oihw, bias, *, padding=1, stride=1):
    """ConvBlock forward: conv2d + bias + ReLU.  NCHW in / NCHW out (PyTorch semantics)."""
    N, Cin, H, W = x_nchw.shape
    Cout, Cin_w, KH, KW = w_oihw.shape
    assert Cin_w == Cin
    H_out = (H + 2 * padding - KH) // stride + 1
    W_out = (W + 2 * padding - KW) // stride + 1
    K = KH * KW * Cin
    M = N * H_out * W_out

    # ---- im2col in the wrapper (single fused XLA pass over the small input) ----
    x_pad = jnp.pad(x_nchw, ((0, 0), (0, 0), (padding, padding), (padding, padding)))
    taps = []
    for kh in range(KH):
        for kw in range(KW):
            taps.append(
                x_pad[:, :,
                      kh:kh + stride * (H_out - 1) + 1:stride,
                      kw:kw + stride * (W_out - 1) + 1:stride])    # (N, Cin, H_out, W_out)
    # K ordered as (kh, kw, cin); M ordered as (n, h, w)
    patches_t = (jnp.stack(taps, axis=0)              # (KH*KW, N, Cin, H_out, W_out)
                 .transpose(0, 2, 1, 3, 4)            # (KH*KW, Cin, N, H_out, W_out)
                 .reshape(K, M))
    w2 = w_oihw.transpose(0, 2, 3, 1).reshape(Cout, K)   # K ordered (kh, kw, cin)
    b2 = bias.reshape(Cout, 1).astype(jnp.float32)

    # Sublane-align the contraction axis (zeros contribute nothing to the dot).
    K_pad = ((K + 7) // 8) * 8
    if K_pad != K:
        patches_t = jnp.pad(patches_t, ((0, K_pad - K), (0, 0)))
        w2 = jnp.pad(w2, ((0, 0), (0, K_pad - K)))

    # Lane-dense tiling of the flattened pixel axis (whole batch folded into M).
    M_pad = ((M + 127) // 128) * 128
    TM = min(2048, M_pad)                       # K_pad*TM*4B stays tiny vs VMEM
    M_pad = ((M_pad + TM - 1) // TM) * TM
    if M_pad != M:
        patches_t = jnp.pad(patches_t, ((0, 0), (0, M_pad - M)))

    out_t = pl.pallas_call(
        _conv_block_kernel,
        out_shape=jax.ShapeDtypeStruct((Cout, M_pad), x_nchw.dtype),
        grid=(M_pad // TM,),
        in_specs=[
            pl.BlockSpec((K_pad, TM), lambda i: (0, i)),     # patches tile (streamed)
            pl.BlockSpec((Cout, K_pad), lambda i: (0, 0)),   # weights (resident)
            pl.BlockSpec((Cout, 1), lambda i: (0, 0)),       # bias (resident)
        ],
        out_specs=pl.BlockSpec((Cout, TM), lambda i: (0, i)),
        compiler_params=pltpu.CompilerParams(
            dimension_semantics=("parallel",)),
    )(patches_t, w2, b2)

    # Cheap layout fix-up on the small output: (Cout, N*H_out*W_out) -> NCHW.
    return out_t[:, :M].reshape(Cout, N, H_out, W_out).transpose(1, 0, 2, 3)


def _reference_forward(x, w, b, *, padding=1, stride=1):
    out = jax.lax.conv_general_dilated(
        x, w, window_strides=(stride, stride),
        padding=((padding, padding), (padding, padding)),
        dimension_numbers=("NCHW", "OIHW", "NCHW"))
    out = out + b[None, :, None, None]
    return jnp.maximum(out, 0.0)


if __name__ == "__main__":
    # ConvBlock(inc=4, outc=8, kernel_size=3, padding=1, stride=1,
    #           use_bias=True, activation=nn.ReLU, batch_norm=False)
    N, Cin, Cout, H, W = 2, 4, 8, 16, 16
    KH = KW = 3

    key = jax.random.PRNGKey(0)
    kx, kw_, kb = jax.random.split(key, 3)
    x = jax.random.normal(kx, (N, Cin, H, W), dtype=jnp.float32)

    # Deterministic parameter init (mimics nn.Conv2d's uniform fan-in init).
    fan_in = Cin * KH * KW
    bound = 1.0 / np.sqrt(fan_in)
    w = jax.random.uniform(kw_, (Cout, Cin, KH, KW), jnp.float32, -bound, bound)
    b = jax.random.uniform(kb, (Cout,), jnp.float32, -bound, bound)

    out = jax.block_until_ready(conv_block_forward(x, w, b))
    ref = jax.block_until_ready(_reference_forward(x, w, b))
    np.testing.assert_allclose(np.asarray(out), np.asarray(ref), rtol=1e-4, atol=1e-4)

    # Non-default geometry check (padding=1, stride=2).
    out2 = jax.block_until_ready(conv_block_forward(x, w, b, padding=1, stride=2))
    ref2 = jax.block_until_ready(_reference_forward(x, w, b, padding=1, stride=2))
    np.testing.assert_allclose(np.asarray(out2), np.asarray(ref2), rtol=1e-4, atol=1e-4)

    print("KERNEL_OK")
</pallas_src>

<mosaic_0001>
module attributes {stable_mosaic.version = 11 : i64} {
  func.func @_conv_block_kernel(%arg0: i32, %arg1: memref<40x512xf32, #tpu.memory_space<vmem>>, %arg2: memref<8x40xf32, #tpu.memory_space<vmem>>, %arg3: memref<8x1xf32, #tpu.memory_space<vmem>>, %arg4: memref<8x512xf32, #tpu.memory_space<vmem>>) attributes {dimension_semantics = [#tpu.dimension_semantics<parallel>], iteration_bounds = array<i64: 1>, scalar_prefetch = 0 : i64, scratch_operands = 0 : i64, tpu.core_type = #tpu.core_type<tc>, window_params = [{transform_indices = @transform_0, window_bounds = array<i64: 40, 512>}, {pipeline_mode = #tpu.pipeline_mode<synchronous>, transform_indices = @transform_1, window_bounds = array<i64: 8, 40>}, {pipeline_mode = #tpu.pipeline_mode<synchronous>, transform_indices = @transform_2, window_bounds = array<i64: 8, 1>}, {transform_indices = @transform_3, window_bounds = array<i64: 8, 512>}]} {
    %c0 = arith.constant 0 : index
    %c0_0 = arith.constant 0 : index
    %0 = vector.load %arg2[%c0, %c0_0] : memref<8x40xf32, #tpu.memory_space<vmem>>, vector<8x40xf32>
    %c0_1 = arith.constant 0 : index
    %c0_2 = arith.constant 0 : index
    %1 = vector.load %arg1[%c0_1, %c0_2] : memref<40x512xf32, #tpu.memory_space<vmem>>, vector<40x512xf32>
    %cst = arith.constant dense<0.000000e+00> : vector<8x512xf32>
    %2 = tpu.matmul %0, %1, %cst {dimension_numbers = #tpu.dot_dimension_numbers<[1], [0], [0], [1], [0, 0, 1, 1], [], []>} : vector<8x40xf32>, vector<40x512xf32>, vector<8x512xf32> -> vector<8x512xf32>
    %c0_3 = arith.constant 0 : index
    %c0_4 = arith.constant 0 : index
    %3 = vector.load %arg3[%c0_3, %c0_4] : memref<8x1xf32, #tpu.memory_space<vmem>>, vector<8x1xf32>
    %4 = vector.broadcast %3 : vector<8x1xf32> to vector<8x512xf32>
    %5 = arith.addf %2, %4 : vector<8x512xf32>
    %cst_5 = arith.constant 0.000000e+00 : f32
    %6 = vector.broadcast %cst_5 : f32 to vector<8x512xf32>
    %7 = arith.maximumf %5, %6 : vector<8x512xf32>
    %c0_6 = arith.constant 0 : index
    %c0_7 = arith.constant 0 : index
    %8 = vector.load %arg4[%c0_6, %c0_7] : memref<8x512xf32, #tpu.memory_space<vmem>>, vector<8x512xf32>
    tpu.vector_store %arg4[%c0_6, %c0_7], %7 {strides = array<i32>} : memref<8x512xf32, #tpu.memory_space<vmem>>, vector<8x512xf32>,
    return
  }
  func.func @transform_0(%arg0: i32) -> (i32, i32) {
    %c0_i32 = arith.constant 0 : i32
    %c0_i32_0 = arith.constant 0 : i32
    return %c0_i32, %arg0 : i32, i32
  }
  func.func @transform_1(%arg0: i32) -> (i32, i32) {
    %c0_i32 = arith.constant 0 : i32
    %c0_i32_0 = arith.constant 0 : i32
    %c0_i32_1 = arith.constant 0 : i32
    return %c0_i32, %c0_i32_0 : i32, i32
  }
  func.func @transform_2(%arg0: i32) -> (i32, i32) {
    %c0_i32 = arith.constant 0 : i32
    %c0_i32_0 = arith.constant 0 : i32
    %c0_i32_1 = arith.constant 0 : i32
    return %c0_i32, %c0_i32_0 : i32, i32
  }
  func.func @transform_3(%arg0: i32) -> (i32, i32) {
    %c0_i32 = arith.constant 0 : i32
    %c0_i32_0 = arith.constant 0 : i32
    return %c0_i32, %arg0 : i32, i32
  }
}

</mosaic_0001>

<llo_original>
// kernel: tpu_custom_call.1
$region0: #{tpu_custom_call.1}
  #allocation0 [shape = 'u32[]', space=smem, size = 0x4, offset = 0x4, fixed_abs, tag = 'smem constant byte address 0x4 - core index']
  #allocation1 [shape = 'u32[144,128]{1,0:T(1,128)}', space=vmem, size = 0x12000, scoped, tag = 'internal scratch']
  %s0 = inlined_call_operand.hbm [shape: f32[40,512], index: 0, kind: input, shape index: {}]
  %s1 = inlined_call_operand.vmem [shape: f32[8,40], index: 1, kind: input, shape index: {}]
  %s2 = inlined_call_operand.vmem [shape: f32[8,1], index: 2, kind: input, shape index: {}]
  %s3 = inlined_call_operand.hbm [shape: f32[8,512], index: 3, kind: output, shape index: {}]
  %s4 = sld [smem:[#allocation0]]
  $region26: #{tpu_custom_call.1} parent=0
    _
  %s6 = ssub.s32 1, %s4
  %s7 = scalar_select 0, %s6, %s4
  $region1: #{tpu_custom_call.1} parent=0
    #allocation2 [shape = 'u8[81920]{0}', space=vmem, size = 0x14000, scoped, tag = 'input window, operand 0, single buffered']
    #allocation3 [shape = 's32[1]{0}', space=sflag, size = 0x4, scoped, tag = 'scoped memory for tpu_custom_call.1']
    #allocation4 [shape = 's32[1]{0}', space=sflag, size = 0x4, scoped, tag = 'scoped memory for tpu_custom_call.1']
    #allocation5 [shape = 'u8[16384]{0}', space=vmem, size = 0x4000, scoped, tag = 'output window, operand 0, single buffered']
    %8 = vsyncpa [#allocation3], 0
    %9 = vsyncpa [#allocation4], 0
    // Predicated region
    $region2: #{tpu_custom_call.1} parent=1 // pred_check
      _
    $region3: #{tpu_custom_call.1} parent=1 // pred_check_branch
      %11 = sbr.rel (0) target = $region5
    $region4: #{tpu_custom_call.1} parent=1 // pred_region
      %s13 = ssub.s32 2560, 2560
      %14 = vsyncadd [#allocation3], %s13
      %s15 = sshll.u32 [#allocation2], 4
      %s16 = int_to_ptr.vmem [resolvable:$true] %s15
      %21 = dma.hbm_to_vmem [thread:$0]  %s0, 2560, %s16, [#allocation3], 512, 512, 32
    $region5: #{tpu_custom_call.1} parent=1 // pred_fallthru
      _
    // Predicated region
    $region6: #{tpu_custom_call.1} parent=1 // pred_check
      _
    $region7: #{tpu_custom_call.1} parent=1 // pred_check_branch
      %23 = sbr.rel (0) target = $region9
    $region8: #{tpu_custom_call.1} parent=1 // pred_region
      _
    $region9: #{tpu_custom_call.1} parent=1 // pred_fallthru
      _
    // Predicated region
    $region10: #{tpu_custom_call.1} parent=1 // pred_check
      _
    $region11: #{tpu_custom_call.1} parent=1 // pred_check_branch
      %25 = sbr.rel (0) target = $region13
    $region12: #{tpu_custom_call.1} parent=1 // pred_region
      _
    $region13: #{tpu_custom_call.1} parent=1 // pred_fallthru
      _
    // Predicated region
    $region14: #{tpu_custom_call.1} parent=1 // pred_check
      _
    $region15: #{tpu_custom_call.1} parent=1 // pred_check_branch
      %27 = sbr.rel (0) target = $region17
    $region16: #{tpu_custom_call.1} parent=1 // pred_region
      %28 = dma.done [#allocation3], 2560
    $region17: #{tpu_custom_call.1} parent=1 // pred_fallthru
      _
    %v29 = vld [vmem:[%s1] sm:$0xff]
    %v30 = vld [vmem:[#allocation2] sm:$0xff]
    %v31 = vld [vmem:[#allocation2 + $0x8] sm:$0xff]
    %v32 = vld [vmem:[#allocation2 + $0x10] sm:$0xff]
    %v33 = vld [vmem:[#allocation2 + $0x18] sm:$0xff]
    %v34 = vld [vmem:[#allocation2 + $0x20] sm:$0xff]
    %v35 = vld [vmem:[#allocation2 + $0x28] sm:$0xff]
    %v36 = vld [vmem:[#allocation2 + $0x30] sm:$0xff]
    %v37 = vld [vmem:[#allocation2 + $0x38] sm:$0xff]
    %v38 = vld [vmem:[#allocation2 + $0x40] sm:$0xff]
    %v39 = vld [vmem:[#allocation2 + $0x48] sm:$0xff]
    %v40 = vld [vmem:[#allocation2 + $0x50] sm:$0xff]
    %v41 = vld [vmem:[#allocation2 + $0x58] sm:$0xff]
    %v42 = vld [vmem:[#allocation2 + $0x60] sm:$0xff]
    %v43 = vld [vmem:[#allocation2 + $0x68] sm:$0xff]
    %v44 = vld [vmem:[#allocation2 + $0x70] sm:$0xff]
    %v45 = vld [vmem:[#allocation2 + $0x78] sm:$0xff]
    %v46 = vld [vmem:[#allocation2 + $0x80] sm:$0xff]
    %v47 = vld [vmem:[#allocation2 + $0x88] sm:$0xff]
    %v48 = vld [vmem:[#allocation2 + $0x90] sm:$0xff]
    %v49 = vld [vmem:[#allocation2 + $0x98] sm:$0xff]
    %v50 = vld [vmem:[%s2] sm:$0xff]
    %52 = vset.pattern.permute.xlu0 0
    %53 = vperm.xlu0 %52, %v50
    %v54 = vpop.permute.xlu0 %53
    %vm56 = vcmask 326656
    %v58 = vsel %vm56, %v29, 0
    %60 = vmatprep.subr.mxu0 0.0
    %61 = vmatpush1.msra.mxu0 0.0
    %62 = vmatprep.subr.mxu0 0.0
    %63 = vmatpush1.msra.mxu0 0.0
    %64 = vmatprep.subr.mxu0 0.0
    %65 = vmatpush1.msra.mxu0 0.0
    %66 = vmatprep.subr.mxu0 0.0
    %67 = vmatpush1.msra.mxu0 0.0
    %68 = vmatprep.subr.mxu0 0.0
    %69 = vmatpush1.msra.mxu0 0.0
    %70 = vmatprep.subr.mxu0 0.0
    %71 = vmatpush1.msra.mxu0 0.0
    %72 = vmatprep.subr.mxu0 0.0
    %73 = vmatpush1.msra.mxu0 0.0
    %74 = vmatprep.subr.mxu0 0.0
    %75 = vmatpush1.msra.mxu0 0.0
    %76 = vmatprep.subr.mxu0 0.0
    %77 = vmatpush1.msra.mxu0 0.0
    %78 = vmatprep.subr.mxu0 0.0
    %79 = vmatpush1.msra.mxu0 0.0
    %80 = vmatprep.subr.mxu0 0.0
    %81 = vmatpush1.msra.mxu0 0.0
    %82 = vmatprep.subr.mxu0 %v47
    %83 = vmatpush1.msra.mxu0 %v46
    %84 = vmatprep.subr.mxu0 %v43
    %85 = vmatpush1.msra.mxu0 %v42
    %86 = vmatprep.subr.mxu0 %v39
    %87 = vmatpush1.msra.mxu0 %v38
    %88 = vmatprep.subr.mxu0 %v35
    %89 = vmatpush1.msra.mxu0 %v34
    %90 = vmatprep.subr.mxu0 %v31
    %91 = vmatpush1.msra.mxu0 %v30
    %92 = vmatprep.subr.mxu0 0.0
    %93 = vmatpush2.msra.mxu0 0.0
    %94 = vmatprep.subr.mxu0 0.0
    %95 = vmatpush2.msra.mxu0 0.0
    %96 = vmatprep.subr.mxu0 0.0
    %97 = vmatpush2.msra.mxu0 0.0
    %98 = vmatprep.subr.mxu0 0.0
    %99 = vmatpush2.msra.mxu0 0.0
    %100 = vmatprep.subr.mxu0 0.0
    %101 = vmatpush2.msra.mxu0 0.0
    %102 = vmatprep.subr.mxu0 0.0
    %103 = vmatpush2.msra.mxu0 0.0
    %104 = vmatprep.subr.mxu0 0.0
    %105 = vmatpush2.msra.mxu0 0.0
    %106 = vmatprep.subr.mxu0 0.0
    %107 = vmatpush2.msra.mxu0 0.0
    %108 = vmatprep.subr.mxu0 0.0
    %109 = vmatpush2.msra.mxu0 0.0
    %110 = vmatprep.subr.mxu0 0.0
    %111 = vmatpush2.msra.mxu0 0.0
    %112 = vmatprep.subr.mxu0 0.0
    %113 = vmatpush2.msra.mxu0 0.0
    %114 = vmatprep.subr.mxu0 0.0
    %115 = vmatpush2.msra.mxu0 0.0
    %116 = vmatprep.subr.mxu0 0.0
    %117 = vmatpush2.msra.mxu0 0.0
    %118 = vmatprep.subr.mxu0 0.0
    %119 = vmatpush2.msra.mxu0 0.0
    %120 = vmatprep.subr.mxu0 0.0
    %121 = vmatpush2.msra.mxu0 0.0
    %122 = vmatprep.subr.mxu0 0.0
    %123 = vmatpush2.msra.mxu0 0.0
    %124 = vmatprep.mubr.f32.mxu0 0.0
    %125 = vmatmul.mubr.f32.gmra.mxu0 %v58
    %v126 = vpop.f32.mrf.mxu0
    %v127 = vadd.f32 %v54, %v126
    %v128 = vpop.f32.mrf.mxu0
    %v129 = vadd.f32 %v54, %v128
    %130 = vdwg.mxu0
    %131 = vmatprep.subr.mxu0 0.0
    %132 = vmatpush1.msra.mxu0 0.0
    %133 = vmatprep.subr.mxu0 0.0
    %134 = vmatpush1.msra.mxu0 0.0
    %135 = vmatprep.subr.mxu0 0.0
    %136 = vmatpush1.msra.mxu0 0.0
    %137 = vmatprep.subr.mxu0 0.0
    %138 = vmatpush1.msra.mxu0 0.0
    %139 = vmatprep.subr.mxu0 0.0
    %140 = vmatpush1.msra.mxu0 0.0
    %141 = vmatprep.subr.mxu0 0.0
    %142 = vmatpush1.msra.mxu0 0.0
    %143 = vmatprep.subr.mxu0 0.0
    %144 = vmatpush1.msra.mxu0 0.0
    %145 = vmatprep.subr.mxu0 0.0
    %146 = vmatpush1.msra.mxu0 0.0
    %147 = vmatprep.subr.mxu0 0.0
    %148 = vmatpush1.msra.mxu0 0.0
    %149 = vmatprep.subr.mxu0 0.0
    %150 = vmatpush1.msra.mxu0 0.0
    %151 = vmatprep.subr.mxu0 0.0
    %152 = vmatpush1.msra.mxu0 0.0
    %153 = vmatprep.subr.mxu0 %v49
    %154 = vmatpush1.msra.mxu0 %v48
    %155 = vmatprep.subr.mxu0 %v45
    %156 = vmatpush1.msra.mxu0 %v44
    %157 = vmatprep.subr.mxu0 %v41
    %158 = vmatpush1.msra.mxu0 %v40
    %159 = vmatprep.subr.mxu0 %v37
    %160 = vmatpush1.msra.mxu0 %v36
    %161 = vmatprep.subr.mxu0 %v33
    %162 = vmatpush1.msra.mxu0 %v32
    %163 = vmatprep.subr.mxu0 0.0
    %164 = vmatpush2.msra.mxu0 0.0
    %165 = vmatprep.subr.mxu0 0.0
    %166 = vmatpush2.msra.mxu0 0.0
    %167 = vmatprep.subr.mxu0 0.0
    %168 = vmatpush2.msra.mxu0 0.0
    %169 = vmatprep.subr.mxu0 0.0
    %170 = vmatpush2.msra.mxu0 0.0
    %171 = vmatprep.subr.mxu0 0.0
    %172 = vmatpush2.msra.mxu0 0.0
    %173 = vmatprep.subr.mxu0 0.0
    %174 = vmatpush2.msra.mxu0 0.0
    %175 = vmatprep.subr.mxu0 0.0
    %176 = vmatpush2.msra.mxu0 0.0
    %177 = vmatprep.subr.mxu0 0.0
    %178 = vmatpush2.msra.mxu0 0.0
    %179 = vmatprep.subr.mxu0 0.0
    %180 = vmatpush2.msra.mxu0 0.0
    %181 = vmatprep.subr.mxu0 0.0
    %182 = vmatpush2.msra.mxu0 0.0
    %183 = vmatprep.subr.mxu0 0.0
    %184 = vmatpush2.msra.mxu0 0.0
    %185 = vmatprep.subr.mxu0 0.0
    %186 = vmatpush2.msra.mxu0 0.0
    %187 = vmatprep.subr.mxu0 0.0
    %188 = vmatpush2.msra.mxu0 0.0
    %189 = vmatprep.subr.mxu0 0.0
    %190 = vmatpush2.msra.mxu0 0.0
    %191 = vmatprep.subr.mxu0 0.0
    %192 = vmatpush2.msra.mxu0 0.0
    %193 = vmatprep.subr.mxu0 0.0
    %194 = vmatpush2.msra.mxu0 0.0
    %195 = vmatprep.mubr.f32.mxu0 0.0
    %196 = vmatmul.mubr.f32.gmra.mxu0 %v58
    %v197 = vpop.f32.mrf.mxu0
    %v198 = vadd.f32 %v54, %v197
    %v199 = vpop.f32.mrf.mxu0
    %v200 = vadd.f32 %v54, %v199
    %201 = vdwg.mxu0
    %v202 = vmax.f32 %v127, 0.0
    %v203 = vmax.f32 %v129, 0.0
    %v204 = vmax.f32 %v198, 0.0
    %v205 = vmax.f32 %v200, 0.0
    %206 = vst [vmem:[#allocation5] sm:$0xff] %v202
    %207 = vst [vmem:[#allocation5 + $0x8] sm:$0xff] %v203
    %208 = vst [vmem:[#allocation5 + $0x10] sm:$0xff] %v204
    %209 = vst [vmem:[#allocation5 + $0x18] sm:$0xff] %v205
    // Predicated region
    $region18: #{tpu_custom_call.1} parent=1 // pred_check
      _
    $region19: #{tpu_custom_call.1} parent=1 // pred_check_branch
      %211 = sbr.rel (0) target = $region21
    $region20: #{tpu_custom_call.1} parent=1 // pred_region
      %s213 = ssub.s32 512, 512
      %214 = vsyncadd [#allocation4], %s213
      %s216 = sshll.u32 [#allocation5], 4
      %s217 = int_to_ptr.vmem [resolvable:$true] %s216
      %219 = dma.vmem_to_hbm [thread:$0]  %s217, 512, %s3, [#allocation4]
    $region21: #{tpu_custom_call.1} parent=1 // pred_fallthru
      _
    // Predicated region
    $region22: #{tpu_custom_call.1} parent=1 // pred_check
      _
    $region23: #{tpu_custom_call.1} parent=1 // pred_check_branch
      %221 = sbr.rel (0) target = $region25
    $region24: #{tpu_custom_call.1} parent=1 // pred_region
      %222 = dma.done [#allocation4], 512
    $region25: #{tpu_custom_call.1} parent=1 // pred_fallthru
      _
    %223 = vsyncpa [#allocation3], 1
    %224 = vsyncpa [#allocation4], 1

</llo_original>
